<compile_context>
chip_gen: v7x
topology: tpu7x:2x2x1
jax: 0.10.0
libtpu: 0.0.40
codegen_flags: <defaults>
</compile_context>

<pallas_src>
import jax
import jax.numpy as jnp
from jax.experimental import pallas as pl
from jax.experimental.pallas import tpu as pltpu

# ----------------------- model hyper-parameters -----------------------------
FEA_DIM  = 64     # data_info['fea_dim']
OUT1     = 128    # netpara['out1']
OUT2     = 128    # netpara['out2']  (must equal OUT1 for the residual add)
LAYERNUM = 3      # netpara['layernum']
OUTLAST  = 8      # model_opt['outlast']
TB_MAX   = 2048   # cap on rows per grid step
BATCH    = 256    # example batch for the demo run


def _leaky_relu(v):
    # max(v, 0.01*v) == LeakyReLU(v, 0.01); one fewer VALU op than where(v>0,...)
    return jnp.maximum(v, 0.01 * v)


def full_connect_res_kernel(x_ref, w1_ref, b1_ref, wz_ref, bz_ref,
                            wl_ref, bl_ref, out_ref):
    # x_ref : (TB, FEA_DIM)            f32  (cast to bf16 in-kernel)
    # w1_ref: (FEA_DIM, OUT1)          bf16   b1_ref: (1, OUT1)           f32
    # wz_ref: (LAYERNUM, OUT1, OUT2)   bf16   bz_ref: (LAYERNUM, 1, OUT2) f32
    # wl_ref: (OUT2, OUTLAST)          bf16   bl_ref: (1, OUTLAST)        f32
    # out_ref: (TB, OUTLAST)           f32
    x = x_ref[...].astype(jnp.bfloat16)

    # classifier: Linear + LeakyReLU (+ Dropout == identity in eval)
    h = jnp.dot(x, w1_ref[...], preferred_element_type=jnp.float32)
    h = _leaky_relu(h + b1_ref[...])                       # f32 elementwise

    # residual blocks — static unroll (LAYERNUM is a compile-time constant)
    for i in range(LAYERNUM):
        z = jnp.dot(h.astype(jnp.bfloat16), wz_ref[i],
                    preferred_element_type=jnp.float32)
        z = _leaky_relu(z + bz_ref[i])                     # bz pre-shaped (1, OUT2)
        h = h + z

    # last: Linear — written directly at OUTLAST width (no lane padding)
    out = jnp.dot(h.astype(jnp.bfloat16), wl_ref[...],
                  preferred_element_type=jnp.float32)
    out_ref[...] = out + bl_ref[...]


def prepare_params(params):
    """One-time parameter prep (bf16 casts / bias reshapes). Call once, reuse."""
    w1, b1, wz, bz, wl, bl = params
    return (
        w1.astype(jnp.bfloat16),                 # (FEA_DIM, OUT1)
        b1.reshape(1, OUT1).astype(jnp.float32), # (1, OUT1)
        wz.astype(jnp.bfloat16),                 # (LAYERNUM, OUT1, OUT2)
        bz.reshape(LAYERNUM, 1, OUT2).astype(jnp.float32),
        wl.astype(jnp.bfloat16),                 # (OUT2, OUTLAST)
        bl.reshape(1, OUTLAST).astype(jnp.float32),
    )


def _choose_tb(B):
    """Batch tile: ~2 grid steps (v7x dual-TC), rounded to 8 sublanes, capped."""
    half = -(-B // 2)           # ceil(B / 2)
    tb = -(-half // 8) * 8      # round up to multiple of 8
    return max(8, min(tb, TB_MAX))


def full_connect_res_forward(x, prepared_params):
    """x: (B, 1, FEA_DIM) or (B, FEA_DIM) — mirrors torch.squeeze(x).
    prepared_params: output of prepare_params (bf16 weights, shaped biases)."""
    w1_bf, b1_2d, wz_bf, bz3, wl_bf, bl_2d = prepared_params

    x2d = x.reshape(-1, FEA_DIM).astype(jnp.float32)   # safe squeeze, f32 in
    B = x2d.shape[0]
    tb = _choose_tb(B)
    Bp = pl.cdiv(B, tb) * tb
    if Bp != B:
        x2d = jnp.pad(x2d, ((0, Bp - B), (0, 0)))

    grid = (Bp // tb,)
    flops = 2 * Bp * (FEA_DIM * OUT1 + LAYERNUM * OUT1 * OUT2 + OUT2 * OUTLAST)
    bytes_accessed = (
        x2d.size * 4
        + (w1_bf.size + wz_bf.size + wl_bf.size) * 2
        + (b1_2d.size + bz3.size + bl_2d.size) * 4
        + Bp * OUTLAST * 4)

    out = pl.pallas_call(
        full_connect_res_kernel,
        out_shape=jax.ShapeDtypeStruct((Bp, OUTLAST), jnp.float32),
        grid_spec=pltpu.PrefetchScalarGridSpec(
            num_scalar_prefetch=0,
            grid=grid,
            in_specs=[
                pl.BlockSpec((tb, FEA_DIM), lambda i: (i, 0)),              # x tile
                pl.BlockSpec((FEA_DIM, OUT1), lambda i: (0, 0)),            # W1 (resident)
                pl.BlockSpec((1, OUT1), lambda i: (0, 0)),                  # b1
                pl.BlockSpec((LAYERNUM, OUT1, OUT2), lambda i: (0, 0, 0)),  # Wz
                pl.BlockSpec((LAYERNUM, 1, OUT2), lambda i: (0, 0, 0)),     # bz
                pl.BlockSpec((OUT2, OUTLAST), lambda i: (0, 0)),            # Wlast
                pl.BlockSpec((1, OUTLAST), lambda i: (0, 0)),               # blast
            ],
            out_specs=pl.BlockSpec((tb, OUTLAST), lambda i: (i, 0)),
        ),
        compiler_params=pltpu.CompilerParams(
            dimension_semantics=("parallel",)),
        cost_estimate=pl.CostEstimate(
            flops=flops, transcendentals=0, bytes_accessed=bytes_accessed),
    )(x2d, w1_bf, b1_2d, wz_bf, bz3, wl_bf, bl_2d)

    return out if Bp == B else out[:B]


def init_params(key):
    ks = jax.random.split(key, 6)
    scale = 0.05
    w1 = scale * jax.random.normal(ks[0], (FEA_DIM, OUT1), jnp.float32)
    b1 = scale * jax.random.normal(ks[1], (1, OUT1), jnp.float32)
    wz = scale * jax.random.normal(ks[2], (LAYERNUM, OUT1, OUT2), jnp.float32)
    bz = scale * jax.random.normal(ks[3], (LAYERNUM, OUT2), jnp.float32)
    wl = scale * jax.random.normal(ks[4], (OUT2, OUTLAST), jnp.float32)
    bl = scale * jax.random.normal(ks[5], (1, OUTLAST), jnp.float32)
    return (w1, b1, wz, bz, wl, bl)


def reference_forward(x, params):
    """Pure-JAX reference (same bf16-operand / f32-accumulate numerics).
    Note: bf16 operands mean results will not bit-match a pure-f32 PyTorch
    forward; atol/rtol ~2e-3 is the expected agreement."""
    w1, b1, wz, bz, wl, bl = params
    h = jnp.dot(x.reshape(-1, FEA_DIM).astype(jnp.bfloat16),
                w1.astype(jnp.bfloat16), preferred_element_type=jnp.float32)
    h = _leaky_relu(h + b1)
    for i in range(LAYERNUM):
        z = jnp.dot(h.astype(jnp.bfloat16), wz[i].astype(jnp.bfloat16),
                    preferred_element_type=jnp.float32)
        z = _leaky_relu(z + bz[i][None, :])
        h = h + z
    return jnp.dot(h.astype(jnp.bfloat16), wl.astype(jnp.bfloat16),
                   preferred_element_type=jnp.float32) + bl


if __name__ == "__main__":
    key = jax.random.PRNGKey(0)
    kx, kp = jax.random.split(key)
    # input as it would arrive from an upstream module: (B, 1, FEA_DIM)
    x = jax.random.normal(kx, (BATCH, 1, FEA_DIM), jnp.float32)
    params = init_params(kp)
    prepared = prepare_params(params)      # one-time weight prep (not per-call)

    out = full_connect_res_forward(x, prepared)
    out = jax.block_until_ready(out)

    ref = reference_forward(x, params)
    assert out.shape == (BATCH, OUTLAST), f"bad shape {out.shape}"
    assert jnp.allclose(out, ref, atol=2e-3, rtol=2e-3), "mismatch vs reference"
    print("KERNEL_OK")
</pallas_src>

<mosaic_0001>
module attributes {stable_mosaic.version = 11 : i64} {
  func.func @full_connect_res_kernel(%arg0: i32, %arg1: memref<128x64xf32, #tpu.memory_space<vmem>>, %arg2: memref<64x128xbf16, #tpu.memory_space<vmem>>, %arg3: memref<1x128xf32, #tpu.memory_space<vmem>>, %arg4: memref<3x128x128xbf16, #tpu.memory_space<vmem>>, %arg5: memref<3x1x128xf32, #tpu.memory_space<vmem>>, %arg6: memref<128x8xbf16, #tpu.memory_space<vmem>>, %arg7: memref<1x8xf32, #tpu.memory_space<vmem>>, %arg8: memref<128x8xf32, #tpu.memory_space<vmem>>) attributes {dimension_semantics = [#tpu.dimension_semantics<parallel>], iteration_bounds = array<i64: 2>, scalar_prefetch = 0 : i64, scratch_operands = 0 : i64, tpu.core_type = #tpu.core_type<tc>, window_params = [{transform_indices = @transform_0, window_bounds = array<i64: 128, 64>}, {pipeline_mode = #tpu.pipeline_mode<synchronous>, transform_indices = @transform_1, window_bounds = array<i64: 64, 128>}, {pipeline_mode = #tpu.pipeline_mode<synchronous>, transform_indices = @transform_2, window_bounds = array<i64: 1, 128>}, {pipeline_mode = #tpu.pipeline_mode<synchronous>, transform_indices = @transform_3, window_bounds = array<i64: 3, 128, 128>}, {pipeline_mode = #tpu.pipeline_mode<synchronous>, transform_indices = @transform_4, window_bounds = array<i64: 3, 1, 128>}, {pipeline_mode = #tpu.pipeline_mode<synchronous>, transform_indices = @transform_5, window_bounds = array<i64: 128, 8>}, {pipeline_mode = #tpu.pipeline_mode<synchronous>, transform_indices = @transform_6, window_bounds = array<i64: 1, 8>}, {transform_indices = @transform_7, window_bounds = array<i64: 128, 8>}]} {
    %c0 = arith.constant 0 : index
    %c0_0 = arith.constant 0 : index
    %0 = vector.load %arg1[%c0, %c0_0] : memref<128x64xf32, #tpu.memory_space<vmem>>, vector<128x64xf32>
    %1 = arith.truncf %0 : vector<128x64xf32> to vector<128x64xbf16>
    %c0_1 = arith.constant 0 : index
    %c0_2 = arith.constant 0 : index
    %2 = vector.load %arg2[%c0_1, %c0_2] : memref<64x128xbf16, #tpu.memory_space<vmem>>, vector<64x128xbf16>
    %cst = arith.constant dense<0.000000e+00> : vector<128x128xf32>
    %3 = tpu.matmul %1, %2, %cst {dimension_numbers = #tpu.dot_dimension_numbers<[1], [0], [0], [1], [0, 0, 1, 1], [], []>} : vector<128x64xbf16>, vector<64x128xbf16>, vector<128x128xf32> -> vector<128x128xf32>
    %c0_3 = arith.constant 0 : index
    %c0_4 = arith.constant 0 : index
    %4 = vector.load %arg3[%c0_3, %c0_4] : memref<1x128xf32, #tpu.memory_space<vmem>>, vector<1x128xf32>
    %5 = vector.broadcast %4 : vector<1x128xf32> to vector<128x128xf32>
    %6 = arith.addf %3, %5 : vector<128x128xf32>
    %cst_5 = arith.constant 0.00999999977 : f32
    %7 = vector.broadcast %cst_5 : f32 to vector<128x128xf32>
    %8 = arith.mulf %7, %6 : vector<128x128xf32>
    %9 = arith.maximumf %6, %8 : vector<128x128xf32>
    %10 = arith.truncf %9 : vector<128x128xf32> to vector<128x128xbf16>
    %c0_6 = arith.constant 0 : index
    %c0_7 = arith.constant 0 : index
    %c0_8 = arith.constant 0 : index
    %11 = vector.load %arg4[%c0_6, %c0_7, %c0_8] : memref<3x128x128xbf16, #tpu.memory_space<vmem>>, vector<1x128x128xbf16>
    %12 = vector.shape_cast %11 : vector<1x128x128xbf16> to vector<128x128xbf16>
    %cst_9 = arith.constant dense<0.000000e+00> : vector<128x128xf32>
    %13 = tpu.matmul %10, %12, %cst_9 {dimension_numbers = #tpu.dot_dimension_numbers<[1], [0], [0], [1], [0, 0, 1, 1], [], []>} : vector<128x128xbf16>, vector<128x128xbf16>, vector<128x128xf32> -> vector<128x128xf32>
    %c0_10 = arith.constant 0 : index
    %c0_11 = arith.constant 0 : index
    %c0_12 = arith.constant 0 : index
    %14 = vector.load %arg5[%c0_10, %c0_11, %c0_12] : memref<3x1x128xf32, #tpu.memory_space<vmem>>, vector<1x1x128xf32>
    %15 = vector.shape_cast %14 : vector<1x1x128xf32> to vector<1x128xf32>
    %16 = vector.broadcast %15 : vector<1x128xf32> to vector<128x128xf32>
    %17 = arith.addf %13, %16 : vector<128x128xf32>
    %cst_13 = arith.constant 0.00999999977 : f32
    %18 = vector.broadcast %cst_13 : f32 to vector<128x128xf32>
    %19 = arith.mulf %18, %17 : vector<128x128xf32>
    %20 = arith.maximumf %17, %19 : vector<128x128xf32>
    %21 = arith.addf %9, %20 : vector<128x128xf32>
    %22 = arith.truncf %21 : vector<128x128xf32> to vector<128x128xbf16>
    %c1 = arith.constant 1 : index
    %c0_14 = arith.constant 0 : index
    %c0_15 = arith.constant 0 : index
    %23 = vector.load %arg4[%c1, %c0_14, %c0_15] : memref<3x128x128xbf16, #tpu.memory_space<vmem>>, vector<1x128x128xbf16>
    %24 = vector.shape_cast %23 : vector<1x128x128xbf16> to vector<128x128xbf16>
    %cst_16 = arith.constant dense<0.000000e+00> : vector<128x128xf32>
    %25 = tpu.matmul %22, %24, %cst_16 {dimension_numbers = #tpu.dot_dimension_numbers<[1], [0], [0], [1], [0, 0, 1, 1], [], []>} : vector<128x128xbf16>, vector<128x128xbf16>, vector<128x128xf32> -> vector<128x128xf32>
    %c1_17 = arith.constant 1 : index
    %c0_18 = arith.constant 0 : index
    %c0_19 = arith.constant 0 : index
    %26 = vector.load %arg5[%c1_17, %c0_18, %c0_19] : memref<3x1x128xf32, #tpu.memory_space<vmem>>, vector<1x1x128xf32>
    %27 = vector.shape_cast %26 : vector<1x1x128xf32> to vector<1x128xf32>
    %28 = vector.broadcast %27 : vector<1x128xf32> to vector<128x128xf32>
    %29 = arith.addf %25, %28 : vector<128x128xf32>
    %cst_20 = arith.constant 0.00999999977 : f32
    %30 = vector.broadcast %cst_20 : f32 to vector<128x128xf32>
    %31 = arith.mulf %30, %29 : vector<128x128xf32>
    %32 = arith.maximumf %29, %31 : vector<128x128xf32>
    %33 = arith.addf %21, %32 : vector<128x128xf32>
    %34 = arith.truncf %33 : vector<128x128xf32> to vector<128x128xbf16>
    %c2 = arith.constant 2 : index
    %c0_21 = arith.constant 0 : index
    %c0_22 = arith.constant 0 : index
    %35 = vector.load %arg4[%c2, %c0_21, %c0_22] : memref<3x128x128xbf16, #tpu.memory_space<vmem>>, vector<1x128x128xbf16>
    %36 = vector.shape_cast %35 : vector<1x128x128xbf16> to vector<128x128xbf16>
    %cst_23 = arith.constant dense<0.000000e+00> : vector<128x128xf32>
    %37 = tpu.matmul %34, %36, %cst_23 {dimension_numbers = #tpu.dot_dimension_numbers<[1], [0], [0], [1], [0, 0, 1, 1], [], []>} : vector<128x128xbf16>, vector<128x128xbf16>, vector<128x128xf32> -> vector<128x128xf32>
    %c2_24 = arith.constant 2 : index
    %c0_25 = arith.constant 0 : index
    %c0_26 = arith.constant 0 : index
    %38 = vector.load %arg5[%c2_24, %c0_25, %c0_26] : memref<3x1x128xf32, #tpu.memory_space<vmem>>, vector<1x1x128xf32>
    %39 = vector.shape_cast %38 : vector<1x1x128xf32> to vector<1x128xf32>
    %40 = vector.broadcast %39 : vector<1x128xf32> to vector<128x128xf32>
    %41 = arith.addf %37, %40 : vector<128x128xf32>
    %cst_27 = arith.constant 0.00999999977 : f32
    %42 = vector.broadcast %cst_27 : f32 to vector<128x128xf32>
    %43 = arith.mulf %42, %41 : vector<128x128xf32>
    %44 = arith.maximumf %41, %43 : vector<128x128xf32>
    %45 = arith.addf %33, %44 : vector<128x128xf32>
    %46 = arith.truncf %45 : vector<128x128xf32> to vector<128x128xbf16>
    %c0_28 = arith.constant 0 : index
    %c0_29 = arith.constant 0 : index
    %47 = vector.load %arg6[%c0_28, %c0_29] : memref<128x8xbf16, #tpu.memory_space<vmem>>, vector<128x8xbf16>
    %cst_30 = arith.constant dense<0.000000e+00> : vector<128x8xf32>
    %48 = tpu.matmul %46, %47, %cst_30 {dimension_numbers = #tpu.dot_dimension_numbers<[1], [0], [0], [1], [0, 0, 1, 1], [], []>} : vector<128x128xbf16>, vector<128x8xbf16>, vector<128x8xf32> -> vector<128x8xf32>
    %c0_31 = arith.constant 0 : index
    %c0_32 = arith.constant 0 : index
    %49 = vector.load %arg7[%c0_31, %c0_32] : memref<1x8xf32, #tpu.memory_space<vmem>>, vector<1x8xf32>
    %50 = vector.broadcast %49 : vector<1x8xf32> to vector<128x8xf32>
    %51 = arith.addf %48, %50 : vector<128x8xf32>
    %c0_33 = arith.constant 0 : index
    %c0_34 = arith.constant 0 : index
    %52 = vector.load %arg8[%c0_33, %c0_34] : memref<128x8xf32, #tpu.memory_space<vmem>>, vector<128x8xf32>
    tpu.vector_store %arg8[%c0_33, %c0_34], %51 {strides = array<i32>} : memref<128x8xf32, #tpu.memory_space<vmem>>, vector<128x8xf32>,
    return
  }
  func.func @transform_0(%arg0: i32) -> (i32, i32) {
    %c0_i32 = arith.constant 0 : i32
    %c0_i32_0 = arith.constant 0 : i32
    return %arg0, %c0_i32 : i32, i32
  }
  func.func @transform_1(%arg0: i32) -> (i32, i32) {
    %c0_i32 = arith.constant 0 : i32
    %c0_i32_0 = arith.constant 0 : i32
    %c0_i32_1 = arith.constant 0 : i32
    return %c0_i32, %c0_i32_0 : i32, i32
  }
  func.func @transform_2(%arg0: i32) -> (i32, i32) {
    %c0_i32 = arith.constant 0 : i32
    %c0_i32_0 = arith.constant 0 : i32
    %c0_i32_1 = arith.constant 0 : i32
    return %c0_i32, %c0_i32_0 : i32, i32
  }
  func.func @transform_3(%arg0: i32) -> (i32, i32, i32) {
    %c0_i32 = arith.constant 0 : i32
    %c0_i32_0 = arith.constant 0 : i32
    %c0_i32_1 = arith.constant 0 : i32
    %c0_i32_2 = arith.constant 0 : i32
    return %c0_i32, %c0_i32_0, %c0_i32_1 : i32, i32, i32
  }
  func.func @transform_4(%arg0: i32) -> (i32, i32, i32) {
    %c0_i32 = arith.constant 0 : i32
    %c0_i32_0 = arith.constant 0 : i32
    %c0_i32_1 = arith.constant 0 : i32
    %c0_i32_2 = arith.constant 0 : i32
    return %c0_i32, %c0_i32_0, %c0_i32_1 : i32, i32, i32
  }
  func.func @transform_5(%arg0: i32) -> (i32, i32) {
    %c0_i32 = arith.constant 0 : i32
    %c0_i32_0 = arith.constant 0 : i32
    %c0_i32_1 = arith.constant 0 : i32
    return %c0_i32, %c0_i32_0 : i32, i32
  }
  func.func @transform_6(%arg0: i32) -> (i32, i32) {
    %c0_i32 = arith.constant 0 : i32
    %c0_i32_0 = arith.constant 0 : i32
    %c0_i32_1 = arith.constant 0 : i32
    return %c0_i32, %c0_i32_0 : i32, i32
  }
  func.func @transform_7(%arg0: i32) -> (i32, i32) {
    %c0_i32 = arith.constant 0 : i32
    %c0_i32_0 = arith.constant 0 : i32
    return %arg0, %c0_i32 : i32, i32
  }
}

</mosaic_0001>

<llo_original>
// kernel: tpu_custom_call.1
$region0: #{tpu_custom_call.1}
  #allocation0 [shape = 'u32[]', space=smem, size = 0x4, offset = 0x4, fixed_abs, tag = 'smem constant byte address 0x4 - core index']
  #allocation1 [shape = 'u32[144,128]{1,0:T(1,128)}', space=vmem, size = 0x12000, scoped, tag = 'internal scratch']
  %s0 = inlined_call_operand.vmem [shape: f32[256,64], index: 0, kind: input, shape index: {}]
  %s1 = inlined_call_operand.vmem [shape: bf16[64,128], index: 1, kind: input, shape index: {}]
  %s2 = inlined_call_operand.vmem [shape: f32[1,128], index: 2, kind: input, shape index: {}]
  %s3 = inlined_call_operand.vmem [shape: bf16[3,128,128], index: 3, kind: input, shape index: {}]
  %s4 = inlined_call_operand.vmem [shape: f32[3,1,128], index: 4, kind: input, shape index: {}]
  %s5 = inlined_call_operand.vmem [shape: bf16[128,8], index: 5, kind: input, shape index: {}]
  %s6 = inlined_call_operand.vmem [shape: f32[1,8], index: 6, kind: input, shape index: {}]
  %s7 = inlined_call_operand.vmem [shape: f32[256,8], index: 7, kind: output, shape index: {}]
  %s8 = sld [smem:[#allocation0]]
  $region61: #{tpu_custom_call.1} parent=0
    _
  %s10 = ssub.s32 1, %s8
  %s11 = scalar_select 0, %s10, %s8
  loop: start=0, step=1, limit=4
  $region2: #{tpu_custom_call.1} parent=0 // loop_pre_header
    _
  $region3: #{tpu_custom_call.1} parent=0 // loop_header
    %s13 = sphi 0, %s17
    %p14 = scmp.ge.s32.totalorder %s13, 4
    %s23 = sphi 0, %s25
    %s26 = sphi 0, %s23
    %s27 = sphi 0, %s26
    %s43 = sphi 0, %s27
    %s47 = sphi 0, %s47
    %s49 = sphi 0, %s47
    %s50 = sphi 0, %s49
    %s64 = sphi 0, %s50
    %s68 = sphi 0, %s68
    %s70 = sphi 0, %s68
    %s71 = sphi 0, %s70
    %s85 = sphi 0, %s71
    %s89 = sphi 0, %s89
    %s91 = sphi 0, %s89
    %s92 = sphi 0, %s91
    %s106 = sphi 0, %s92
    %s110 = sphi 0, %s110
    %s112 = sphi 0, %s110
    %s113 = sphi 0, %s112
    %s127 = sphi 0, %s113
    %s131 = sphi 0, %s131
    %s133 = sphi 0, %s131
    %s134 = sphi 0, %s133
    %s148 = sphi 0, %s134
    %s152 = sphi 0, %s152
    %s154 = sphi 0, %s152
    %s155 = sphi 0, %s154
    %s169 = sphi 0, %s155
    %s175 = sphi 0, %s177
    %s178 = sphi 0, %s175
    %s179 = sphi 0, %s178
    %s195 = sphi 0, %s179
  $region4: #{tpu_custom_call.1} parent=0 // loop_header_branch
    %16 = sbr.rel (%p14) target = $region8
  $region5: #{tpu_custom_call.1} parent=0 // loop_body
    %s18 = ssub.s32 %s13, 1
    %s19 = ssub.s32 %s13, 2
    %s20 = sadd.s32 %s13, 1
    %s21 = ssub.s32 %s13, %s20
    %p22 = scmp.eq.s32.totalorder %s21, 0
    %s24 = sadd.s32 %s23, 1
    %s25 = scalar_select %p22, %s23, %s24
    %p28 = pneg %p22
    %p29 = scmp.eq.s32.totalorder %s13, 1
    %p30 = por %p28, %p29
    %p31 = scmp.ne.s32.totalorder %s23, %s26
    %p32 = scmp.eq.s32.totalorder %s13, 0
    %p33 = por %p31, %p32
    %p34 = scmp.ne.s32.totalorder %s23, %s26
    %p35 = scmp.eq.s32.totalorder %s18, 1
    %p36 = por %p34, %p35
    %p37 = scmp.ne.s32.totalorder %s26, %s27
    %p38 = scmp.eq.s32.totalorder %s18, 0
    %p39 = por %p37, %p38
    %p40 = scmp.ne.s32.totalorder %s26, %s27
    %p41 = scmp.eq.s32.totalorder %s19, 1
    %p42 = por %p40, %p41
    %p44 = scmp.ne.s32.totalorder %s27, %s43
    %p45 = scmp.eq.s32.totalorder %s19, 0
    %p46 = por %p44, %p45
    %s48 = sadd.s32 %s47, 1
    %p51 = scmp.eq.s32.totalorder %s13, 1
    %p52 = scmp.ne.s32.totalorder %s47, %s49
    %p53 = scmp.eq.s32.totalorder %s13, 0
    %p54 = por %p52, %p53
    %p55 = scmp.ne.s32.totalorder %s47, %s49
    %p56 = scmp.eq.s32.totalorder %s18, 1
    %p57 = por %p55, %p56
    %p58 = scmp.ne.s32.totalorder %s49, %s50
    %p59 = scmp.eq.s32.totalorder %s18, 0
    %p60 = por %p58, %p59
    %p61 = scmp.ne.s32.totalorder %s49, %s50
    %p62 = scmp.eq.s32.totalorder %s19, 1
    %p63 = por %p61, %p62
    %p65 = scmp.ne.s32.totalorder %s50, %s64
    %p66 = scmp.eq.s32.totalorder %s19, 0
    %p67 = por %p65, %p66
    %s69 = sadd.s32 %s68, 1
    %p72 = scmp.eq.s32.totalorder %s13, 1
    %p73 = scmp.ne.s32.totalorder %s68, %s70
    %p74 = scmp.eq.s32.totalorder %s13, 0
    %p75 = por %p73, %p74
    %p76 = scmp.ne.s32.totalorder %s68, %s70
    %p77 = scmp.eq.s32.totalorder %s18, 1
    %p78 = por %p76, %p77
    %p79 = scmp.ne.s32.totalorder %s70, %s71
    %p80 = scmp.eq.s32.totalorder %s18, 0
    %p81 = por %p79, %p80
    %p82 = scmp.ne.s32.totalorder %s70, %s71
    %p83 = scmp.eq.s32.totalorder %s19, 1
    %p84 = por %p82, %p83
    %p86 = scmp.ne.s32.totalorder %s71, %s85
    %p87 = scmp.eq.s32.totalorder %s19, 0
    %p88 = por %p86, %p87
    %s90 = sadd.s32 %s89, 1
    %p93 = scmp.eq.s32.totalorder %s13, 1
    %p94 = scmp.ne.s32.totalorder %s89, %s91
    %p95 = scmp.eq.s32.totalorder %s13, 0
    %p96 = por %p94, %p95
    %p97 = scmp.ne.s32.totalorder %s89, %s91
    %p98 = scmp.eq.s32.totalorder %s18, 1
    %p99 = por %p97, %p98
    %p100 = scmp.ne.s32.totalorder %s91, %s92
    %p101 = scmp.eq.s32.totalorder %s18, 0
    %p102 = por %p100, %p101
    %p103 = scmp.ne.s32.totalorder %s91, %s92
    %p104 = scmp.eq.s32.totalorder %s19, 1
    %p105 = por %p103, %p104
    %p107 = scmp.ne.s32.totalorder %s92, %s106
    %p108 = scmp.eq.s32.totalorder %s19, 0
    %p109 = por %p107, %p108
    %s111 = sadd.s32 %s110, 1
    %p114 = scmp.eq.s32.totalorder %s13, 1
    %p115 = scmp.ne.s32.totalorder %s110, %s112
    %p116 = scmp.eq.s32.totalorder %s13, 0
    %p117 = por %p115, %p116
    %p118 = scmp.ne.s32.totalorder %s110, %s112
    %p119 = scmp.eq.s32.totalorder %s18, 1
    %p120 = por %p118, %p119
    %p121 = scmp.ne.s32.totalorder %s112, %s113
    %p122 = scmp.eq.s32.totalorder %s18, 0
    %p123 = por %p121, %p122
    %p124 = scmp.ne.s32.totalorder %s112, %s113
    %p125 = scmp.eq.s32.totalorder %s19, 1
    %p126 = por %p124, %p125
    %p128 = scmp.ne.s32.totalorder %s113, %s127
    %p129 = scmp.eq.s32.totalorder %s19, 0
    %p130 = por %p128, %p129
    %s132 = sadd.s32 %s131, 1
    %p135 = scmp.eq.s32.totalorder %s13, 1
    %p136 = scmp.ne.s32.totalorder %s131, %s133
    %p137 = scmp.eq.s32.totalorder %s13, 0
    %p138 = por %p136, %p137
    %p139 = scmp.ne.s32.totalorder %s131, %s133
    %p140 = scmp.eq.s32.totalorder %s18, 1
    %p141 = por %p139, %p140
    %p142 = scmp.ne.s32.totalorder %s133, %s134
    %p143 = scmp.eq.s32.totalorder %s18, 0
    %p144 = por %p142, %p143
    %p145 = scmp.ne.s32.totalorder %s133, %s134
    %p146 = scmp.eq.s32.totalorder %s19, 1
    %p147 = por %p145, %p146
    %p149 = scmp.ne.s32.totalorder %s134, %s148
    %p150 = scmp.eq.s32.totalorder %s19, 0
    %p151 = por %p149, %p150
    %s153 = sadd.s32 %s152, 1
    %p156 = scmp.eq.s32.totalorder %s13, 1
    %p157 = scmp.ne.s32.totalorder %s152, %s154
    %p158 = scmp.eq.s32.totalorder %s13, 0
    %p159 = por %p157, %p158
    %p160 = scmp.ne.s32.totalorder %s152, %s154
    %p161 = scmp.eq.s32.totalorder %s18, 1
    %p162 = por %p160, %p161
    %p163 = scmp.ne.s32.totalorder %s154, %s155
    %p164 = scmp.eq.s32.totalorder %s18, 0
    %p165 = por %p163, %p164
    %p166 = scmp.ne.s32.totalorder %s154, %s155
    %p167 = scmp.eq.s32.totalorder %s19, 1
    %p168 = por %p166, %p167
    %p170 = scmp.ne.s32.totalorder %s155, %s169
    %p171 = scmp.eq.s32.totalorder %s19, 0
    %p172 = por %p170, %p171
    %s173 = ssub.s32 %s13, %s20
    %p174 = scmp.eq.s32.totalorder %s173, 0
    %s176 = sadd.s32 %s175, 1
    %s177 = scalar_select %p174, %s175, %s176
    %p180 = pneg %p174
    %p181 = scmp.eq.s32.totalorder %s13, 1
    %p182 = por %p180, %p181
    %p183 = scmp.ne.s32.totalorder %s175, %s178
    %p184 = scmp.eq.s32.totalorder %s13, 0
    %p185 = por %p183, %p184
    %p186 = scmp.ne.s32.totalorder %s175, %s178
    %p187 = scmp.eq.s32.totalorder %s18, 1
    %p188 = por %p186, %p187
    %p189 = scmp.ne.s32.totalorder %s178, %s179
    %p190 = scmp.eq.s32.totalorder %s18, 0
    %p191 = por %p189, %p190
    %p192 = scmp.ne.s32.totalorder %s178, %s179
    %p193 = scmp.eq.s32.totalorder %s19, 1
    %p194 = por %p192, %p193
    %p196 = scmp.ne.s32.totalorder %s179, %s195
    %p197 = scmp.eq.s32.totalorder %s19, 0
    %p198 = por %p196, %p197
    %p199 = scmp.le.s32.totalorder 1, %s13
    %p200 = scmp.lt.s32.totalorder %s13, 3
    %p201 = pnand %p199, %p200
    %p202 = pneg %p201
    // Predicated region
    $region9: #{tpu_custom_call.1} parent=5 // pred_check
      _
    $region10: #{tpu_custom_call.1} parent=5 // pred_check_branch
      %204 = sbr.rel (%p201) target = $region12
    $region11: #{tpu_custom_call.1} parent=5 // pred_region
      %s205 = ssub.s32 %s13, 1
      // Predicated region
      $region13: #{tpu_custom_call.1} parent=11 // pred_check
        %p206 = pneg %p60
      $region14: #{tpu_custom_call.1} parent=11 // pred_check_branch
        %208 = sbr.rel (%p206) target = $region16
      $region15: #{tpu_custom_call.1} parent=11 // pred_region
        _
      $region16: #{tpu_custom_call.1} parent=11 // pred_fallthru
        _
      // Predicated region
      $region17: #{tpu_custom_call.1} parent=11 // pred_check
        %p209 = pneg %p81
      $region18: #{tpu_custom_call.1} parent=11 // pred_check_branch
        %211 = sbr.rel (%p209) target = $region20
      $region19: #{tpu_custom_call.1} parent=11 // pred_region
        _
      $region20: #{tpu_custom_call.1} parent=11 // pred_fallthru
        _
      // Predicated region
      $region21: #{tpu_custom_call.1} parent=11 // pred_check
        %p212 = pneg %p102
      $region22: #{tpu_custom_call.1} parent=11 // pred_check_branch
        %214 = sbr.rel (%p212) target = $region24
      $region23: #{tpu_custom_call.1} parent=11 // pred_region
        _
      $region24: #{tpu_custom_call.1} parent=11 // pred_fallthru
        _
      // Predicated region
      $region25: #{tpu_custom_call.1} parent=11 // pred_check
        %p215 = pneg %p123
      $region26: #{tpu_custom_call.1} parent=11 // pred_check_branch
        %217 = sbr.rel (%p215) target = $region28
      $region27: #{tpu_custom_call.1} parent=11 // pred_region
        _
      $region28: #{tpu_custom_call.1} parent=11 // pred_fallthru
        _
      // Predicated region
      $region29: #{tpu_custom_call.1} parent=11 // pred_check
        %p218 = pneg %p144
      $region30: #{tpu_custom_call.1} parent=11 // pred_check_branch
        %220 = sbr.rel (%p218) target = $region32
      $region31: #{tpu_custom_call.1} parent=11 // pred_region
        _
      $region32: #{tpu_custom_call.1} parent=11 // pred_fallthru
        _
      // Predicated region
      $region33: #{tpu_custom_call.1} parent=11 // pred_check
        %p221 = pneg %p165
      $region34: #{tpu_custom_call.1} parent=11 // pred_check_branch
        %223 = sbr.rel (%p221) target = $region36
      $region35: #{tpu_custom_call.1} parent=11 // pred_region
        _
      $region36: #{tpu_custom_call.1} parent=11 // pred_fallthru
        _
    $region12: #{tpu_custom_call.1} parent=5 // pred_fallthru
      _
    %p224 = scmp.lt.s32.totalorder %s13, 2
    // Predicated region
    $region37: #{tpu_custom_call.1} parent=5 // pred_check
      %p225 = pneg %p224
    $region38: #{tpu_custom_call.1} parent=5 // pred_check_branch
      %227 = sbr.rel (%p225) target = $region40
    $region39: #{tpu_custom_call.1} parent=5 // pred_region
      // Predicated region
      $region41: #{tpu_custom_call.1} parent=39 // pred_check
        %p228 = pneg %p33
      $region42: #{tpu_custom_call.1} parent=39 // pred_check_branch
        %230 = sbr.rel (%p228) target = $region44
      $region43: #{tpu_custom_call.1} parent=39 // pred_region
        %s231 = smul.u32 16, %s13
        %p232 = scmp.lt.s32.totalorder %s231, 31
        %s233 = scalar_select %p232, %s231, 31
        %s234 = smul.addr %s233, 8
        %s235 = scalar_lea.vmem %s0, %s234
        %s236 = smul.u32 16, %s13
      $region44: #{tpu_custom_call.1} parent=39 // pred_fallthru
        _
    $region40: #{tpu_custom_call.1} parent=5 // pred_fallthru
      _
    %p237 = scmp.le.s32.totalorder 1, %s13
    %p238 = scmp.lt.s32.totalorder %s13, 3
    %p239 = pnand %p237, %p238
    %p240 = pneg %p239
    // Predicated region
    $region45: #{tpu_custom_call.1} parent=5 // pred_check
      _
    $region46: #{tpu_custom_call.1} parent=5 // pred_check_branch
      %242 = sbr.rel (%p239) target = $region48
    $region47: #{tpu_custom_call.1} parent=5 // pred_region
      %s243 = ssub.s32 %s13, 1
      %s244 = smul.u32 16, %s18
      %p245 = scmp.lt.s32.totalorder %s244, 31
      %s246 = scalar_select %p245, %s244, 31
      %s247 = smul.addr %s246, 8
      %s248 = scalar_lea.vmem %s0, %s247
      %p249 = pneg %p39
      %p250 = pneg %p36
      %p251 = pneg %p60
      %p252 = pneg %p57
      %p253 = pneg %p81
      %p254 = pneg %p78
      %p255 = pneg %p102
      %p256 = pneg %p99
      %p257 = pneg %p123
      %p258 = pneg %p120
      %p259 = pneg %p144
      %p260 = pneg %p141
      %p261 = pneg %p165
      %p262 = pneg %p162
      %p263 = pneg %p191
      %p264 = pneg %p188
      %s265 = smul.u32 16, %s18
      %p266 = scmp.lt.s32.totalorder %s265, 31
      %s267 = scalar_select %p266, %s265, 31
      %s268 = smul.addr %s267, 8
      %s269 = scalar_lea.vmem %s7, %s268
      %s270 = smul.u32 16, %s18
      %p271 = scmp.lt.s32.totalorder %s270, 31
      %s272 = scalar_select %p271, %s270, 31
      %s273 = smul.addr %s272, 8
      %s274 = scalar_lea.vmem %s0, %s273
      %s275 = smul.u32 16, %s18
      %s276 = smul.u32 16, %s18
      %p277 = scmp.lt.s32.totalorder %s276, 31
      %s278 = scalar_select %p277, %s276, 31
      %s279 = smul.addr %s278, 8
      %s280 = scalar_lea.vmem %s7, %s279
      %s281 = smul.u32 16, %s18
      %v283 = vld [vmem:[%s274] sm:$0xff]
      %v284 = vld [vmem:[%s274 + $0x8] sm:$0xff]
      %v285 = vld [vmem:[%s274 + $0x10] sm:$0xff]
      %v286 = vld [vmem:[%s274 + $0x18] sm:$0xff]
      %v287 = vld [vmem:[%s274 + $0x20] sm:$0xff]
      %v288 = vld [vmem:[%s274 + $0x28] sm:$0xff]
      %v289 = vld [vmem:[%s274 + $0x30] sm:$0xff]
      %v290 = vld [vmem:[%s274 + $0x38] sm:$0xff]
      %v291 = vld [vmem:[%s274 + $0x40] sm:$0xff]
      %v292 = vld [vmem:[%s274 + $0x48] sm:$0xff]
      %v293 = vld [vmem:[%s274 + $0x50] sm:$0xff]
      %v294 = vld [vmem:[%s274 + $0x58] sm:$0xff]
      %v295 = vld [vmem:[%s274 + $0x60] sm:$0xff]
      %v296 = vld [vmem:[%s274 + $0x68] sm:$0xff]
      %v297 = vld [vmem:[%s274 + $0x70] sm:$0xff]
      %v298 = vld [vmem:[%s274 + $0x78] sm:$0xff]
      %v299 = vpack.c.bf16 %v284, %v283
      %v300 = vpack.c.bf16 %v286, %v285
      %v301 = vpack.c.bf16 %v288, %v287
      %v302 = vpack.c.bf16 %v290, %v289
      %v303 = vpack.c.bf16 %v292, %v291
      %v304 = vpack.c.bf16 %v294, %v293
      %v305 = vpack.c.bf16 %v296, %v295
      %v306 = vpack.c.bf16 %v298, %v297
      %v307 = vld [vmem:[%s1] sm:$0xf]
      %v308 = vld [vmem:[%s1 + $0x4] sm:$0xf]
      %v309 = vld [vmem:[%s1 + $0x8] sm:$0xf]
      %v310 = vld [vmem:[%s1 + $0xc] sm:$0xf]
      %v311 = vld [vmem:[%s1 + $0x10] sm:$0xf]
      %v312 = vld [vmem:[%s1 + $0x14] sm:$0xf]
      %v313 = vld [vmem:[%s1 + $0x18] sm:$0xf]
      %v314 = vld [vmem:[%s1 + $0x1c] sm:$0xf]
      %v315 = vld [vmem:[%s2] sm:$0x1]
      %v317 = vlaneseq
      %v318 = vshrl.u32 %v317, 7
      %v319 = vsub.s32 0, %v318
      %v320 = vrot.slane %v315, %v319
      %v330 = vunpack.c.l.b16 %v307
      %v331 = vunpack.c.l.b16 %v308
      %v332 = vunpack.c.l.b16 %v309
      %v333 = vunpack.c.l.b16 %v310
      %v334 = vunpack.c.l.b16 %v311
      %v335 = vunpack.c.l.b16 %v312
      %v336 = vunpack.c.l.b16 %v313
      %v337 = vunpack.c.l.b16 %v314
      %v338 = vpack.c.b16 %v331, %v330
      %v339 = vpack.c.b16 %v333, %v332
      %v340 = vpack.c.b16 %v335, %v334
      %v341 = vpack.c.b16 %v337, %v336
      %vm346 = vcmask 523264
      %v348 = vsel %vm346, %v299, 0
      %v351 = vsel %vm346, %v300, 0
      %v354 = vsel %vm346, %v301, 0
      %v357 = vsel %vm346, %v302, 0
      %v360 = vsel %vm346, %v303, 0
      %v363 = vsel %vm346, %v304, 0
      %v366 = vsel %vm346, %v305, 0
      %v369 = vsel %vm346, %v306, 0
      %371 = vmatprep.subr.bf16.mxu0 0
      %372 = vmatpush1.bf16.msra.mxu0 %v338
      %373 = vmatprep.subr.bf16.mxu0 0
      %374 = vmatpush1.bf16.msra.mxu0 %v339
      %375 = vmatprep.subr.bf16.mxu0 0
      %376 = vmatpush1.bf16.msra.mxu0 %v340
      %377 = vmatprep.subr.bf16.mxu0 0
      %378 = vmatpush1.bf16.msra.mxu0 %v341
      %379 = vmatprep.subr.bf16.mxu0 0
      %380 = vmatpush1.bf16.msra.mxu0 0
      %381 = vmatprep.subr.bf16.mxu0 0
      %382 = vmatpush1.bf16.msra.mxu0 0
      %383 = vmatprep.subr.bf16.mxu0 0
      %384 = vmatpush1.bf16.msra.mxu0 0
      %385 = vmatprep.subr.bf16.mxu0 0
      %386 = vmatpush1.bf16.msra.mxu0 0
      %387 = vmatprep.subr.bf16.mxu0 0
      %388 = vmatpush1.bf16.msra.mxu0 0
      %389 = vmatprep.subr.bf16.mxu0 0
      %390 = vmatpush1.bf16.msra.mxu0 0
      %391 = vmatprep.subr.bf16.mxu0 0
      %392 = vmatpush1.bf16.msra.mxu0 0
      %393 = vmatprep.subr.bf16.mxu0 0
      %394 = vmatpush1.bf16.msra.mxu0 0
      %395 = vmatprep.subr.bf16.mxu0 0
      %396 = vmatpush1.bf16.msra.mxu0 0
      %397 = vmatprep.subr.bf16.mxu0 0
      %398 = vmatpush1.bf16.msra.mxu0 0
      %399 = vmatprep.subr.bf16.mxu0 0
      %400 = vmatpush1.bf16.msra.mxu0 0
      %401 = vmatprep.subr.bf16.mxu0 0
      %402 = vmatpush1.bf16.msra.mxu0 0
      %403 = vmatprep.mubr.bf16.mxu0 0
      %404 = vmatmul.mubr.bf16.gmra.mrb[0].mxu0 %v348
      %v405 = vpop.f32.mrb[0].mxu0
      %v406 = vadd.f32 %v320, %v405
      %v407 = vpop.f32.mrb[0].mxu0
      %v408 = vpop.f32.mrb[0].mxu0
      %v409 = vadd.f32 %v320, %v408
      %v410 = vpop.f32.mrb[0].mxu0
      %411 = vmatprep.mubr.bf16.mxu0 0
      %412 = vmatmul.mubr.bf16.gmra.mrb[0].mxu0 %v351
      %v413 = vpop.f32.mrb[0].mxu0
      %v414 = vadd.f32 %v320, %v413
      %v415 = vpop.f32.mrb[0].mxu0
      %v416 = vpop.f32.mrb[0].mxu0
      %v417 = vadd.f32 %v320, %v416
      %v418 = vpop.f32.mrb[0].mxu0
      %419 = vmatprep.mubr.bf16.mxu0 0
      %420 = vmatmul.mubr.bf16.gmra.mrb[0].mxu0 %v354
      %v421 = vpop.f32.mrb[0].mxu0
      %v422 = vadd.f32 %v320, %v421
      %v423 = vpop.f32.mrb[0].mxu0
      %v424 = vpop.f32.mrb[0].mxu0
      %v425 = vadd.f32 %v320, %v424
      %v426 = vpop.f32.mrb[0].mxu0
      %427 = vmatprep.mubr.bf16.mxu0 0
      %428 = vmatmul.mubr.bf16.gmra.mrb[0].mxu0 %v357
      %v429 = vpop.f32.mrb[0].mxu0
      %v430 = vadd.f32 %v320, %v429
      %v431 = vpop.f32.mrb[0].mxu0
      %v432 = vpop.f32.mrb[0].mxu0
      %v433 = vadd.f32 %v320, %v432
      %v434 = vpop.f32.mrb[0].mxu0
      %435 = vmatprep.mubr.bf16.mxu0 0
      %436 = vmatmul.mubr.bf16.gmra.mrb[0].mxu0 %v360
      %v437 = vpop.f32.mrb[0].mxu0
      %v438 = vadd.f32 %v320, %v437
      %v439 = vpop.f32.mrb[0].mxu0
      %v440 = vpop.f32.mrb[0].mxu0
      %v441 = vadd.f32 %v320, %v440
      %v442 = vpop.f32.mrb[0].mxu0
      %443 = vmatprep.mubr.bf16.mxu0 0
      %444 = vmatmul.mubr.bf16.gmra.mrb[0].mxu0 %v363
      %v445 = vpop.f32.mrb[0].mxu0
      %v446 = vadd.f32 %v320, %v445
      %v447 = vpop.f32.mrb[0].mxu0
      %v448 = vpop.f32.mrb[0].mxu0
      %v449 = vadd.f32 %v320, %v448
      %v450 = vpop.f32.mrb[0].mxu0
      %451 = vmatprep.mubr.bf16.mxu0 0
      %452 = vmatmul.mubr.bf16.gmra.mrb[0].mxu0 %v366
      %v453 = vpop.f32.mrb[0].mxu0
      %v454 = vadd.f32 %v320, %v453
      %v455 = vpop.f32.mrb[0].mxu0
      %v456 = vpop.f32.mrb[0].mxu0
      %v457 = vadd.f32 %v320, %v456
      %v458 = vpop.f32.mrb[0].mxu0
      %459 = vmatprep.mubr.bf16.mxu0 0
      %460 = vmatmul.mubr.bf16.gmra.mrb[0].mxu0 %v369
      %v461 = vpop.f32.mrb[0].mxu0
      %v462 = vadd.f32 %v320, %v461
      %v463 = vpop.f32.mrb[0].mxu0
      %v464 = vpop.f32.mrb[0].mxu0
      %v465 = vadd.f32 %v320, %v464
      %v466 = vpop.f32.mrb[0].mxu0
      %467 = vdwg.mxu0
      %v468 = vmul.f32 %v406, 0.01
      %v469 = vmul.f32 %v409, 0.01
      %v470 = vmul.f32 %v414, 0.01
      %v471 = vmul.f32 %v417, 0.01
      %v472 = vmul.f32 %v422, 0.01
      %v473 = vmul.f32 %v425, 0.01
      %v474 = vmul.f32 %v430, 0.01
      %v475 = vmul.f32 %v433, 0.01
      %v476 = vmul.f32 %v438, 0.01
      %v477 = vmul.f32 %v441, 0.01
      %v478 = vmul.f32 %v446, 0.01
      %v479 = vmul.f32 %v449, 0.01
      %v480 = vmul.f32 %v454, 0.01
      %v481 = vmul.f32 %v457, 0.01
      %v482 = vmul.f32 %v462, 0.01
      %v483 = vmul.f32 %v465, 0.01
      %v484 = vmax.f32 %v406, %v468
      %v485 = vmax.f32 %v409, %v469
      %v486 = vmax.f32 %v414, %v470
      %v487 = vmax.f32 %v417, %v471
      %v488 = vmax.f32 %v422, %v472
      %v489 = vmax.f32 %v425, %v473
      %v490 = vmax.f32 %v430, %v474
      %v491 = vmax.f32 %v433, %v475
      %v492 = vmax.f32 %v438, %v476
      %v493 = vmax.f32 %v441, %v477
      %v494 = vmax.f32 %v446, %v478
      %v495 = vmax.f32 %v449, %v479
      %v496 = vmax.f32 %v454, %v480
      %v497 = vmax.f32 %v457, %v481
      %v498 = vmax.f32 %v462, %v482
      %v499 = vmax.f32 %v465, %v483
      %v500 = vpack.c.bf16 %v485, %v484
      %v501 = vpack.c.bf16 %v487, %v486
      %v502 = vpack.c.bf16 %v489, %v488
      %v503 = vpack.c.bf16 %v491, %v490
      %v504 = vpack.c.bf16 %v493, %v492
      %v505 = vpack.c.bf16 %v495, %v494
      %v506 = vpack.c.bf16 %v497, %v496
      %v507 = vpack.c.bf16 %v499, %v498
      %v508 = vld [vmem:[%s3] sm:$0xf]
      %v509 = vld [vmem:[%s3 + $0x4] sm:$0xf]
      %v510 = vld [vmem:[%s3 + $0x8] sm:$0xf]
      %v511 = vld [vmem:[%s3 + $0xc] sm:$0xf]
      %v512 = vld [vmem:[%s3 + $0x10] sm:$0xf]
      %v513 = vld [vmem:[%s3 + $0x14] sm:$0xf]
      %v514 = vld [vmem:[%s3 + $0x18] sm:$0xf]
      %v515 = vld [vmem:[%s3 + $0x1c] sm:$0xf]
      %v516 = vld [vmem:[%s3 + $0x20] sm:$0xf]
      %v517 = vld [vmem:[%s3 + $0x24] sm:$0xf]
      %v518 = vld [vmem:[%s3 + $0x28] sm:$0xf]
      %v519 = vld [vmem:[%s3 + $0x2c] sm:$0xf]
      %v520 = vld [vmem:[%s3 + $0x30] sm:$0xf]
      %v521 = vld [vmem:[%s3 + $0x34] sm:$0xf]
      %v522 = vld [vmem:[%s3 + $0x38] sm:$0xf]
      %v523 = vld [vmem:[%s3 + $0x3c] sm:$0xf]
      %v524 = vld [vmem:[%s4] sm:$0x1]
      %v526 = vlaneseq
      %v527 = vshrl.u32 %v526, 7
      %v528 = vsub.s32 0, %v527
      %v529 = vrot.slane %v524, %v528
      %v547 = vunpack.c.l.b16 %v508
      %v548 = vunpack.c.l.b16 %v509
      %v549 = vunpack.c.l.b16 %v510
      %v550 = vunpack.c.l.b16 %v511
      %v551 = vunpack.c.l.b16 %v512
      %v552 = vunpack.c.l.b16 %v513
      %v553 = vunpack.c.l.b16 %v514
      %v554 = vunpack.c.l.b16 %v515
      %v555 = vunpack.c.l.b16 %v516
      %v556 = vunpack.c.l.b16 %v517
      %v557 = vunpack.c.l.b16 %v518
      %v558 = vunpack.c.l.b16 %v519
      %v559 = vunpack.c.l.b16 %v520
      %v560 = vunpack.c.l.b16 %v521
      %v561 = vunpack.c.l.b16 %v522
      %v562 = vunpack.c.l.b16 %v523
      %v563 = vpack.c.b16 %v548, %v547
      %v564 = vpack.c.b16 %v550, %v549
      %v565 = vpack.c.b16 %v552, %v551
      %v566 = vpack.c.b16 %v554, %v553
      %v567 = vpack.c.b16 %v556, %v555
      %v568 = vpack.c.b16 %v558, %v557
      %v569 = vpack.c.b16 %v560, %v559
      %v570 = vpack.c.b16 %v562, %v561
      %579 = vmatprep.subr.bf16.mxu0 0
      %580 = vmatpush1.bf16.msra.mxu0 %v563
      %581 = vmatprep.subr.bf16.mxu0 0
      %582 = vmatpush1.bf16.msra.mxu0 %v564
      %583 = vmatprep.subr.bf16.mxu0 0
      %584 = vmatpush1.bf16.msra.mxu0 %v565
      %585 = vmatprep.subr.bf16.mxu0 0
      %586 = vmatpush1.bf16.msra.mxu0 %v566
      %587 = vmatprep.subr.bf16.mxu0 0
      %588 = vmatpush1.bf16.msra.mxu0 %v567
      %589 = vmatprep.subr.bf16.mxu0 0
      %590 = vmatpush1.bf16.msra.mxu0 %v568
      %591 = vmatprep.subr.bf16.mxu0 0
      %592 = vmatpush1.bf16.msra.mxu0 %v569
      %593 = vmatprep.subr.bf16.mxu0 0
      %594 = vmatpush1.bf16.msra.mxu0 %v570
      %595 = vmatprep.subr.bf16.mxu0 0
      %596 = vmatpush1.bf16.msra.mxu0 0
      %597 = vmatprep.subr.bf16.mxu0 0
      %598 = vmatpush1.bf16.msra.mxu0 0
      %599 = vmatprep.subr.bf16.mxu0 0
      %600 = vmatpush1.bf16.msra.mxu0 0
      %601 = vmatprep.subr.bf16.mxu0 0
      %602 = vmatpush1.bf16.msra.mxu0 0
      %603 = vmatprep.subr.bf16.mxu0 0
      %604 = vmatpush1.bf16.msra.mxu0 0
      %605 = vmatprep.subr.bf16.mxu0 0
      %606 = vmatpush1.bf16.msra.mxu0 0
      %607 = vmatprep.subr.bf16.mxu0 0
      %608 = vmatpush1.bf16.msra.mxu0 0
      %609 = vmatprep.subr.bf16.mxu0 0
      %610 = vmatpush1.bf16.msra.mxu0 0
      %611 = vmatprep.mubr.bf16.mxu0 0
      %612 = vmatmul.mubr.bf16.gmra.mrb[0].mxu0 %v500
      %v613 = vpop.f32.mrb[0].mxu0
      %v614 = vadd.f32 %v529, %v613
      %v615 = vpop.f32.mrb[0].mxu0
      %v616 = vpop.f32.mrb[0].mxu0
      %v617 = vadd.f32 %v529, %v616
      %v618 = vpop.f32.mrb[0].mxu0
      %619 = vmatprep.mubr.bf16.mxu0 0
      %620 = vmatmul.mubr.bf16.gmra.mrb[0].mxu0 %v501
      %v621 = vpop.f32.mrb[0].mxu0
      %v622 = vadd.f32 %v529, %v621
      %v623 = vpop.f32.mrb[0].mxu0
      %v624 = vpop.f32.mrb[0].mxu0
      %v625 = vadd.f32 %v529, %v624
      %v626 = vpop.f32.mrb[0].mxu0
      %627 = vmatprep.mubr.bf16.mxu0 0
      %628 = vmatmul.mubr.bf16.gmra.mrb[0].mxu0 %v502
      %v629 = vpop.f32.mrb[0].mxu0
      %v630 = vadd.f32 %v529, %v629
      %v631 = vpop.f32.mrb[0].mxu0
      %v632 = vpop.f32.mrb[0].mxu0
      %v633 = vadd.f32 %v529, %v632
      %v634 = vpop.f32.mrb[0].mxu0
      %635 = vmatprep.mubr.bf16.mxu0 0
      %636 = vmatmul.mubr.bf16.gmra.mrb[0].mxu0 %v503
      %v637 = vpop.f32.mrb[0].mxu0
      %v638 = vadd.f32 %v529, %v637
      %v639 = vpop.f32.mrb[0].mxu0
      %v640 = vpop.f32.mrb[0].mxu0
      %v641 = vadd.f32 %v529, %v640
      %v642 = vpop.f32.mrb[0].mxu0
      %643 = vmatprep.mubr.bf16.mxu0 0
      %644 = vmatmul.mubr.bf16.gmra.mrb[0].mxu0 %v504
      %v645 = vpop.f32.mrb[0].mxu0
      %v646 = vadd.f32 %v529, %v645
      %v647 = vpop.f32.mrb[0].mxu0
      %v648 = vpop.f32.mrb[0].mxu0
      %v649 = vadd.f32 %v529, %v648
      %v650 = vpop.f32.mrb[0].mxu0
      %651 = vmatprep.mubr.bf16.mxu0 0
      %652 = vmatmul.mubr.bf16.gmra.mrb[0].mxu0 %v505
      %v653 = vpop.f32.mrb[0].mxu0
      %v654 = vadd.f32 %v529, %v653
      %v655 = vpop.f32.mrb[0].mxu0
      %v656 = vpop.f32.mrb[0].mxu0
      %v657 = vadd.f32 %v529, %v656
      %v658 = vpop.f32.mrb[0].mxu0
      %659 = vmatprep.mubr.bf16.mxu0 0
      %660 = vmatmul.mubr.bf16.gmra.mrb[0].mxu0 %v506
      %v661 = vpop.f32.mrb[0].mxu0
      %v662 = vadd.f32 %v529, %v661
      %v663 = vpop.f32.mrb[0].mxu0
      %v664 = vpop.f32.mrb[0].mxu0
      %v665 = vadd.f32 %v529, %v664
      %v666 = vpop.f32.mrb[0].mxu0
      %667 = vmatprep.mubr.bf16.mxu0 0
      %668 = vmatmul.mubr.bf16.gmra.mrb[0].mxu0 %v507
      %v669 = vpop.f32.mrb[0].mxu0
      %v670 = vadd.f32 %v529, %v669
      %v671 = vpop.f32.mrb[0].mxu0
      %v672 = vpop.f32.mrb[0].mxu0
      %v673 = vadd.f32 %v529, %v672
      %v674 = vpop.f32.mrb[0].mxu0
      %675 = vdwg.mxu0
      %v676 = vmul.f32 %v614, 0.01
      %v677 = vmul.f32 %v617, 0.01
      %v678 = vmul.f32 %v622, 0.01
      %v679 = vmul.f32 %v625, 0.01
      %v680 = vmul.f32 %v630, 0.01
      %v681 = vmul.f32 %v633, 0.01
      %v682 = vmul.f32 %v638, 0.01
      %v683 = vmul.f32 %v641, 0.01
      %v684 = vmul.f32 %v646, 0.01
      %v685 = vmul.f32 %v649, 0.01
      %v686 = vmul.f32 %v654, 0.01
      %v687 = vmul.f32 %v657, 0.01
      %v688 = vmul.f32 %v662, 0.01
      %v689 = vmul.f32 %v665, 0.01
      %v690 = vmul.f32 %v670, 0.01
      %v691 = vmul.f32 %v673, 0.01
      %v692 = vmax.f32 %v614, %v676
      %v693 = vmax.f32 %v617, %v677
      %v694 = vmax.f32 %v622, %v678
      %v695 = vmax.f32 %v625, %v679
      %v696 = vmax.f32 %v630, %v680
      %v697 = vmax.f32 %v633, %v681
      %v698 = vmax.f32 %v638, %v682
      %v699 = vmax.f32 %v641, %v683
      %v700 = vmax.f32 %v646, %v684
      %v701 = vmax.f32 %v649, %v685
      %v702 = vmax.f32 %v654, %v686
      %v703 = vmax.f32 %v657, %v687
      %v704 = vmax.f32 %v662, %v688
      %v705 = vmax.f32 %v665, %v689
      %v706 = vmax.f32 %v670, %v690
      %v707 = vmax.f32 %v673, %v691
      %v708 = vadd.f32 %v484, %v692
      %v709 = vadd.f32 %v485, %v693
      %v710 = vadd.f32 %v486, %v694
      %v711 = vadd.f32 %v487, %v695
      %v712 = vadd.f32 %v488, %v696
      %v713 = vadd.f32 %v489, %v697
      %v714 = vadd.f32 %v490, %v698
      %v715 = vadd.f32 %v491, %v699
      %v716 = vadd.f32 %v492, %v700
      %v717 = vadd.f32 %v493, %v701
      %v718 = vadd.f32 %v494, %v702
      %v719 = vadd.f32 %v495, %v703
      %v720 = vadd.f32 %v496, %v704
      %v721 = vadd.f32 %v497, %v705
      %v722 = vadd.f32 %v498, %v706
      %v723 = vadd.f32 %v499, %v707
      %v724 = vpack.c.bf16 %v709, %v708
      %v725 = vpack.c.bf16 %v711, %v710
      %v726 = vpack.c.bf16 %v713, %v712
      %v727 = vpack.c.bf16 %v715, %v714
      %v728 = vpack.c.bf16 %v717, %v716
      %v729 = vpack.c.bf16 %v719, %v718
      %v730 = vpack.c.bf16 %v721, %v720
      %v731 = vpack.c.bf16 %v723, %v722
      %s732 = scalar_lea.vmem %s3, 64
      %v733 = vld [vmem:[%s732] sm:$0xf]
      %v734 = vld [vmem:[%s732 + $0x4] sm:$0xf]
      %v735 = vld [vmem:[%s732 + $0x8] sm:$0xf]
      %v736 = vld [vmem:[%s732 + $0xc] sm:$0xf]
      %v737 = vld [vmem:[%s732 + $0x10] sm:$0xf]
      %v738 = vld [vmem:[%s732 + $0x14] sm:$0xf]
      %v739 = vld [vmem:[%s732 + $0x18] sm:$0xf]
      %v740 = vld [vmem:[%s732 + $0x1c] sm:$0xf]
      %v741 = vld [vmem:[%s732 + $0x20] sm:$0xf]
      %v742 = vld [vmem:[%s732 + $0x24] sm:$0xf]
      %v743 = vld [vmem:[%s732 + $0x28] sm:$0xf]
      %v744 = vld [vmem:[%s732 + $0x2c] sm:$0xf]
      %v745 = vld [vmem:[%s732 + $0x30] sm:$0xf]
      %v746 = vld [vmem:[%s732 + $0x34] sm:$0xf]
      %v747 = vld [vmem:[%s732 + $0x38] sm:$0xf]
      %v748 = vld [vmem:[%s732 + $0x3c] sm:$0xf]
      %s749 = scalar_lea.vmem %s4, 1
      %v750 = vld [vmem:[%s749] sm:$0x1]
      %v752 = vlaneseq
      %v753 = vshrl.u32 %v752, 7
      %v754 = vsub.s32 0, %v753
      %v755 = vrot.slane %v750, %v754
      %v773 = vunpack.c.l.b16 %v733
      %v774 = vunpack.c.l.b16 %v734
      %v775 = vunpack.c.l.b16 %v735
      %v776 = vunpack.c.l.b16 %v736
      %v777 = vunpack.c.l.b16 %v737
      %v778 = vunpack.c.l.b16 %v738
      %v779 = vunpack.c.l.b16 %v739
      %v780 = vunpack.c.l.b16 %v740
      %v781 = vunpack.c.l.b16 %v741
      %v782 = vunpack.c.l.b16 %v742
      %v783 = vunpack.c.l.b16 %v743
      %v784 = vunpack.c.l.b16 %v744
      %v785 = vunpack.c.l.b16 %v745
      %v786 = vunpack.c.l.b16 %v746
      %v787 = vunpack.c.l.b16 %v747
      %v788 = vunpack.c.l.b16 %v748
      %v789 = vpack.c.b16 %v774, %v773
      %v790 = vpack.c.b16 %v776, %v775
      %v791 = vpack.c.b16 %v778, %v777
      %v792 = vpack.c.b16 %v780, %v779
      %v793 = vpack.c.b16 %v782, %v781
      %v794 = vpack.c.b16 %v784, %v783
      %v795 = vpack.c.b16 %v786, %v785
      %v796 = vpack.c.b16 %v788, %v787
      %805 = vmatprep.subr.bf16.mxu0 0
      %806 = vmatpush1.bf16.msra.mxu0 %v789
      %807 = vmatprep.subr.bf16.mxu0 0
      %808 = vmatpush1.bf16.msra.mxu0 %v790
      %809 = vmatprep.subr.bf16.mxu0 0
      %810 = vmatpush1.bf16.msra.mxu0 %v791
      %811 = vmatprep.subr.bf16.mxu0 0
      %812 = vmatpush1.bf16.msra.mxu0 %v792
      %813 = vmatprep.subr.bf16.mxu0 0
      %814 = vmatpush1.bf16.msra.mxu0 %v793
      %815 = vmatprep.subr.bf16.mxu0 0
      %816 = vmatpush1.bf16.msra.mxu0 %v794
      %817 = vmatprep.subr.bf16.mxu0 0
      %818 = vmatpush1.bf16.msra.mxu0 %v795
      %819 = vmatprep.subr.bf16.mxu0 0
      %820 = vmatpush1.bf16.msra.mxu0 %v796
      %821 = vmatprep.subr.bf16.mxu0 0
      %822 = vmatpush1.bf16.msra.mxu0 0
      %823 = vmatprep.subr.bf16.mxu0 0
      %824 = vmatpush1.bf16.msra.mxu0 0
      %825 = vmatprep.subr.bf16.mxu0 0
      %826 = vmatpush1.bf16.msra.mxu0 0
      %827 = vmatprep.subr.bf16.mxu0 0
      %828 = vmatpush1.bf16.msra.mxu0 0
      %829 = vmatprep.subr.bf16.mxu0 0
      %830 = vmatpush1.bf16.msra.mxu0 0
      %831 = vmatprep.subr.bf16.mxu0 0
      %832 = vmatpush1.bf16.msra.mxu0 0
      %833 = vmatprep.subr.bf16.mxu0 0
      %834 = vmatpush1.bf16.msra.mxu0 0
      %835 = vmatprep.subr.bf16.mxu0 0
      %836 = vmatpush1.bf16.msra.mxu0 0
      %837 = vmatprep.mubr.bf16.mxu0 0
      %838 = vmatmul.mubr.bf16.gmra.mrb[0].mxu0 %v724
      %v839 = vpop.f32.mrb[0].mxu0
      %v840 = vadd.f32 %v755, %v839
      %v841 = vpop.f32.mrb[0].mxu0
      %v842 = vpop.f32.mrb[0].mxu0
      %v843 = vadd.f32 %v755, %v842
      %v844 = vpop.f32.mrb[0].mxu0
      %845 = vmatprep.mubr.bf16.mxu0 0
      %846 = vmatmul.mubr.bf16.gmra.mrb[0].mxu0 %v725
      %v847 = vpop.f32.mrb[0].mxu0
      %v848 = vadd.f32 %v755, %v847
      %v849 = vpop.f32.mrb[0].mxu0
      %v850 = vpop.f32.mrb[0].mxu0
      %v851 = vadd.f32 %v755, %v850
      %v852 = vpop.f32.mrb[0].mxu0
      %853 = vmatprep.mubr.bf16.mxu0 0
      %854 = vmatmul.mubr.bf16.gmra.mrb[0].mxu0 %v726
      %v855 = vpop.f32.mrb[0].mxu0
      %v856 = vadd.f32 %v755, %v855
      %v857 = vpop.f32.mrb[0].mxu0
      %v858 = vpop.f32.mrb[0].mxu0
      %v859 = vadd.f32 %v755, %v858
      %v860 = vpop.f32.mrb[0].mxu0
      %861 = vmatprep.mubr.bf16.mxu0 0
      %862 = vmatmul.mubr.bf16.gmra.mrb[0].mxu0 %v727
      %v863 = vpop.f32.mrb[0].mxu0
      %v864 = vadd.f32 %v755, %v863
      %v865 = vpop.f32.mrb[0].mxu0
      %v866 = vpop.f32.mrb[0].mxu0
      %v867 = vadd.f32 %v755, %v866
      %v868 = vpop.f32.mrb[0].mxu0
      %869 = vmatprep.mubr.bf16.mxu0 0
      %870 = vmatmul.mubr.bf16.gmra.mrb[0].mxu0 %v728
      %v871 = vpop.f32.mrb[0].mxu0
      %v872 = vadd.f32 %v755, %v871
      %v873 = vpop.f32.mrb[0].mxu0
      %v874 = vpop.f32.mrb[0].mxu0
      %v875 = vadd.f32 %v755, %v874
      %v876 = vpop.f32.mrb[0].mxu0
      %877 = vmatprep.mubr.bf16.mxu0 0
      %878 = vmatmul.mubr.bf16.gmra.mrb[0].mxu0 %v729
      %v879 = vpop.f32.mrb[0].mxu0
      %v880 = vadd.f32 %v755, %v879
      %v881 = vpop.f32.mrb[0].mxu0
      %v882 = vpop.f32.mrb[0].mxu0
      %v883 = vadd.f32 %v755, %v882
      %v884 = vpop.f32.mrb[0].mxu0
      %885 = vmatprep.mubr.bf16.mxu0 0
      %886 = vmatmul.mubr.bf16.gmra.mrb[0].mxu0 %v730
      %v887 = vpop.f32.mrb[0].mxu0
      %v888 = vadd.f32 %v755, %v887
      %v889 = vpop.f32.mrb[0].mxu0
      %v890 = vpop.f32.mrb[0].mxu0
      %v891 = vadd.f32 %v755, %v890
      %v892 = vpop.f32.mrb[0].mxu0
      %893 = vmatprep.mubr.bf16.mxu0 0
      %894 = vmatmul.mubr.bf16.gmra.mrb[0].mxu0 %v731
      %v895 = vpop.f32.mrb[0].mxu0
      %v896 = vadd.f32 %v755, %v895
      %v897 = vpop.f32.mrb[0].mxu0
      %v898 = vpop.f32.mrb[0].mxu0
      %v899 = vadd.f32 %v755, %v898
      %v900 = vpop.f32.mrb[0].mxu0
      %901 = vdwg.mxu0
      %v902 = vmul.f32 %v840, 0.01
      %v903 = vmul.f32 %v843, 0.01
      %v904 = vmul.f32 %v848, 0.01
      %v905 = vmul.f32 %v851, 0.01
      %v906 = vmul.f32 %v856, 0.01
      %v907 = vmul.f32 %v859, 0.01
      %v908 = vmul.f32 %v864, 0.01
      %v909 = vmul.f32 %v867, 0.01
      %v910 = vmul.f32 %v872, 0.01
      %v911 = vmul.f32 %v875, 0.01
      %v912 = vmul.f32 %v880, 0.01
      %v913 = vmul.f32 %v883, 0.01
      %v914 = vmul.f32 %v888, 0.01
      %v915 = vmul.f32 %v891, 0.01
      %v916 = vmul.f32 %v896, 0.01
      %v917 = vmul.f32 %v899, 0.01
      %v918 = vmax.f32 %v840, %v902
      %v919 = vmax.f32 %v843, %v903
      %v920 = vmax.f32 %v848, %v904
      %v921 = vmax.f32 %v851, %v905
      %v922 = vmax.f32 %v856, %v906
      %v923 = vmax.f32 %v859, %v907
      %v924 = vmax.f32 %v864, %v908
      %v925 = vmax.f32 %v867, %v909
      %v926 = vmax.f32 %v872, %v910
      %v927 = vmax.f32 %v875, %v911
      %v928 = vmax.f32 %v880, %v912
      %v929 = vmax.f32 %v883, %v913
      %v930 = vmax.f32 %v888, %v914
      %v931 = vmax.f32 %v891, %v915
      %v932 = vmax.f32 %v896, %v916
      %v933 = vmax.f32 %v899, %v917
      %v934 = vadd.f32 %v708, %v918
      %v935 = vadd.f32 %v709, %v919
      %v936 = vadd.f32 %v710, %v920
      %v937 = vadd.f32 %v711, %v921
      %v938 = vadd.f32 %v712, %v922
      %v939 = vadd.f32 %v713, %v923
      %v940 = vadd.f32 %v714, %v924
      %v941 = vadd.f32 %v715, %v925
      %v942 = vadd.f32 %v716, %v926
      %v943 = vadd.f32 %v717, %v927
      %v944 = vadd.f32 %v718, %v928
      %v945 = vadd.f32 %v719, %v929
      %v946 = vadd.f32 %v720, %v930
      %v947 = vadd.f32 %v721, %v931
      %v948 = vadd.f32 %v722, %v932
      %v949 = vadd.f32 %v723, %v933
      %v950 = vpack.c.bf16 %v935, %v934
      %v951 = vpack.c.bf16 %v937, %v936
      %v952 = vpack.c.bf16 %v939, %v938
      %v953 = vpack.c.bf16 %v941, %v940
      %v954 = vpack.c.bf16 %v943, %v942
      %v955 = vpack.c.bf16 %v945, %v944
      %v956 = vpack.c.bf16 %v947, %v946
      %v957 = vpack.c.bf16 %v949, %v948
      %s958 = scalar_lea.vmem %s3, 128
      %v959 = vld [vmem:[%s958] sm:$0xf]
      %v960 = vld [vmem:[%s958 + $0x4] sm:$0xf]
      %v961 = vld [vmem:[%s958 + $0x8] sm:$0xf]
      %v962 = vld [vmem:[%s958 + $0xc] sm:$0xf]
      %v963 = vld [vmem:[%s958 + $0x10] sm:$0xf]
      %v964 = vld [vmem:[%s958 + $0x14] sm:$0xf]
      %v965 = vld [vmem:[%s958 + $0x18] sm:$0xf]
      %v966 = vld [vmem:[%s958 + $0x1c] sm:$0xf]
      %v967 = vld [vmem:[%s958 + $0x20] sm:$0xf]
      %v968 = vld [vmem:[%s958 + $0x24] sm:$0xf]
      %v969 = vld [vmem:[%s958 + $0x28] sm:$0xf]
      %v970 = vld [vmem:[%s958 + $0x2c] sm:$0xf]
      %v971 = vld [vmem:[%s958 + $0x30] sm:$0xf]
      %v972 = vld [vmem:[%s958 + $0x34] sm:$0xf]
      %v973 = vld [vmem:[%s958 + $0x38] sm:$0xf]
      %v974 = vld [vmem:[%s958 + $0x3c] sm:$0xf]
      %s975 = scalar_lea.vmem %s4, 2
      %v976 = vld [vmem:[%s975] sm:$0x1]
      %v978 = vlaneseq
      %v979 = vshrl.u32 %v978, 7
      %v980 = vsub.s32 0, %v979
      %v981 = vrot.slane %v976, %v980
      %v999 = vunpack.c.l.b16 %v959
      %v1000 = vunpack.c.l.b16 %v960
      %v1001 = vunpack.c.l.b16 %v961
      %v1002 = vunpack.c.l.b16 %v962
      %v1003 = vunpack.c.l.b16 %v963
      %v1004 = vunpack.c.l.b16 %v964
      %v1005 = vunpack.c.l.b16 %v965
      %v1006 = vunpack.c.l.b16 %v966
      %v1007 = vunpack.c.l.b16 %v967
      %v1008 = vunpack.c.l.b16 %v968
      %v1009 = vunpack.c.l.b16 %v969
      %v1010 = vunpack.c.l.b16 %v970
      %v1011 = vunpack.c.l.b16 %v971
      %v1012 = vunpack.c.l.b16 %v972
      %v1013 = vunpack.c.l.b16 %v973
      %v1014 = vunpack.c.l.b16 %v974
      %v1015 = vpack.c.b16 %v1000, %v999
      %v1016 = vpack.c.b16 %v1002, %v1001
      %v1017 = vpack.c.b16 %v1004, %v1003
      %v1018 = vpack.c.b16 %v1006, %v1005
      %v1019 = vpack.c.b16 %v1008, %v1007
      %v1020 = vpack.c.b16 %v1010, %v1009
      %v1021 = vpack.c.b16 %v1012, %v1011
      %v1022 = vpack.c.b16 %v1014, %v1013
      %1031 = vmatprep.subr.bf16.mxu0 0
      %1032 = vmatpush1.bf16.msra.mxu0 %v1015
      %1033 = vmatprep.subr.bf16.mxu0 0
      %1034 = vmatpush1.bf16.msra.mxu0 %v1016
      %1035 = vmatprep.subr.bf16.mxu0 0
      %1036 = vmatpush1.bf16.msra.mxu0 %v1017
      %1037 = vmatprep.subr.bf16.mxu0 0
      %1038 = vmatpush1.bf16.msra.mxu0 %v1018
      %1039 = vmatprep.subr.bf16.mxu0 0
      %1040 = vmatpush1.bf16.msra.mxu0 %v1019
      %1041 = vmatprep.subr.bf16.mxu0 0
      %1042 = vmatpush1.bf16.msra.mxu0 %v1020
      %1043 = vmatprep.subr.bf16.mxu0 0
      %1044 = vmatpush1.bf16.msra.mxu0 %v1021
      %1045 = vmatprep.subr.bf16.mxu0 0
      %1046 = vmatpush1.bf16.msra.mxu0 %v1022
      %1047 = vmatprep.subr.bf16.mxu0 0
      %1048 = vmatpush1.bf16.msra.mxu0 0
      %1049 = vmatprep.subr.bf16.mxu0 0
      %1050 = vmatpush1.bf16.msra.mxu0 0
      %1051 = vmatprep.subr.bf16.mxu0 0
      %1052 = vmatpush1.bf16.msra.mxu0 0
      %1053 = vmatprep.subr.bf16.mxu0 0
      %1054 = vmatpush1.bf16.msra.mxu0 0
      %1055 = vmatprep.subr.bf16.mxu0 0
      %1056 = vmatpush1.bf16.msra.mxu0 0
      %1057 = vmatprep.subr.bf16.mxu0 0
      %1058 = vmatpush1.bf16.msra.mxu0 0
      %1059 = vmatprep.subr.bf16.mxu0 0
      %1060 = vmatpush1.bf16.msra.mxu0 0
      %1061 = vmatprep.subr.bf16.mxu0 0
      %1062 = vmatpush1.bf16.msra.mxu0 0
      %1063 = vmatprep.mubr.bf16.mxu0 0
      %1064 = vmatmul.mubr.bf16.gmra.mrb[0].mxu0 %v950
      %v1065 = vpop.f32.mrb[0].mxu0
      %v1066 = vadd.f32 %v981, %v1065
      %v1067 = vpop.f32.mrb[0].mxu0
      %v1068 = vpop.f32.mrb[0].mxu0
      %v1069 = vadd.f32 %v981, %v1068
      %v1070 = vpop.f32.mrb[0].mxu0
      %1071 = vmatprep.mubr.bf16.mxu0 0
      %1072 = vmatmul.mubr.bf16.gmra.mrb[0].mxu0 %v951
      %v1073 = vpop.f32.mrb[0].mxu0
      %v1074 = vadd.f32 %v981, %v1073
      %v1075 = vpop.f32.mrb[0].mxu0
      %v1076 = vpop.f32.mrb[0].mxu0
      %v1077 = vadd.f32 %v981, %v1076
      %v1078 = vpop.f32.mrb[0].mxu0
      %1079 = vmatprep.mubr.bf16.mxu0 0
      %1080 = vmatmul.mubr.bf16.gmra.mrb[0].mxu0 %v952
      %v1081 = vpop.f32.mrb[0].mxu0
      %v1082 = vadd.f32 %v981, %v1081
      %v1083 = vpop.f32.mrb[0].mxu0
      %v1084 = vpop.f32.mrb[0].mxu0
      %v1085 = vadd.f32 %v981, %v1084
      %v1086 = vpop.f32.mrb[0].mxu0
      %1087 = vmatprep.mubr.bf16.mxu0 0
      %1088 = vmatmul.mubr.bf16.gmra.mrb[0].mxu0 %v953
      %v1089 = vpop.f32.mrb[0].mxu0
      %v1090 = vadd.f32 %v981, %v1089
      %v1091 = vpop.f32.mrb[0].mxu0
      %v1092 = vpop.f32.mrb[0].mxu0
      %v1093 = vadd.f32 %v981, %v1092
      %v1094 = vpop.f32.mrb[0].mxu0
      %1095 = vmatprep.mubr.bf16.mxu0 0
      %1096 = vmatmul.mubr.bf16.gmra.mrb[0].mxu0 %v954
      %v1097 = vpop.f32.mrb[0].mxu0
      %v1098 = vadd.f32 %v981, %v1097
      %v1099 = vpop.f32.mrb[0].mxu0
      %v1100 = vpop.f32.mrb[0].mxu0
      %v1101 = vadd.f32 %v981, %v1100
      %v1102 = vpop.f32.mrb[0].mxu0
      %1103 = vmatprep.mubr.bf16.mxu0 0
      %1104 = vmatmul.mubr.bf16.gmra.mrb[0].mxu0 %v955
      %v1105 = vpop.f32.mrb[0].mxu0
      %v1106 = vadd.f32 %v981, %v1105
      %v1107 = vpop.f32.mrb[0].mxu0
      %v1108 = vpop.f32.mrb[0].mxu0
      %v1109 = vadd.f32 %v981, %v1108
      %v1110 = vpop.f32.mrb[0].mxu0
      %1111 = vmatprep.mubr.bf16.mxu0 0
      %1112 = vmatmul.mubr.bf16.gmra.mrb[0].mxu0 %v956
      %v1113 = vpop.f32.mrb[0].mxu0
      %v1114 = vadd.f32 %v981, %v1113
      %v1115 = vpop.f32.mrb[0].mxu0
      %v1116 = vpop.f32.mrb[0].mxu0
      %v1117 = vadd.f32 %v981, %v1116
      %v1118 = vpop.f32.mrb[0].mxu0
      %1119 = vmatprep.mubr.bf16.mxu0 0
      %1120 = vmatmul.mubr.bf16.gmra.mrb[0].mxu0 %v957
      %v1121 = vpop.f32.mrb[0].mxu0
      %v1122 = vadd.f32 %v981, %v1121
      %v1123 = vpop.f32.mrb[0].mxu0
      %v1124 = vpop.f32.mrb[0].mxu0
      %v1125 = vadd.f32 %v981, %v1124
      %v1126 = vpop.f32.mrb[0].mxu0
      %1127 = vdwg.mxu0
      %v1128 = vmul.f32 %v1066, 0.01
      %v1129 = vmul.f32 %v1069, 0.01
      %v1130 = vmul.f32 %v1074, 0.01
      %v1131 = vmul.f32 %v1077, 0.01
      %v1132 = vmul.f32 %v1082, 0.01
      %v1133 = vmul.f32 %v1085, 0.01
      %v1134 = vmul.f32 %v1090, 0.01
      %v1135 = vmul.f32 %v1093, 0.01
      %v1136 = vmul.f32 %v1098, 0.01
      %v1137 = vmul.f32 %v1101, 0.01
      %v1138 = vmul.f32 %v1106, 0.01
      %v1139 = vmul.f32 %v1109, 0.01
      %v1140 = vmul.f32 %v1114, 0.01
      %v1141 = vmul.f32 %v1117, 0.01
      %v1142 = vmul.f32 %v1122, 0.01
      %v1143 = vmul.f32 %v1125, 0.01
      %v1144 = vmax.f32 %v1066, %v1128
      %v1145 = vmax.f32 %v1069, %v1129
      %v1146 = vmax.f32 %v1074, %v1130
      %v1147 = vmax.f32 %v1077, %v1131
      %v1148 = vmax.f32 %v1082, %v1132
      %v1149 = vmax.f32 %v1085, %v1133
      %v1150 = vmax.f32 %v1090, %v1134
      %v1151 = vmax.f32 %v1093, %v1135
      %v1152 = vmax.f32 %v1098, %v1136
      %v1153 = vmax.f32 %v1101, %v1137
      %v1154 = vmax.f32 %v1106, %v1138
      %v1155 = vmax.f32 %v1109, %v1139
      %v1156 = vmax.f32 %v1114, %v1140
      %v1157 = vmax.f32 %v1117, %v1141
      %v1158 = vmax.f32 %v1122, %v1142
      %v1159 = vmax.f32 %v1125, %v1143
      %v1160 = vadd.f32 %v934, %v1144
      %v1161 = vadd.f32 %v935, %v1145
      %v1162 = vadd.f32 %v936, %v1146
      %v1163 = vadd.f32 %v937, %v1147
      %v1164 = vadd.f32 %v938, %v1148
      %v1165 = vadd.f32 %v939, %v1149
      %v1166 = vadd.f32 %v940, %v1150
      %v1167 = vadd.f32 %v941, %v1151
      %v1168 = vadd.f32 %v942, %v1152
      %v1169 = vadd.f32 %v943, %v1153
      %v1170 = vadd.f32 %v944, %v1154
      %v1171 = vadd.f32 %v945, %v1155
      %v1172 = vadd.f32 %v946, %v1156
      %v1173 = vadd.f32 %v947, %v1157
      %v1174 = vadd.f32 %v948, %v1158
      %v1175 = vadd.f32 %v949, %v1159
      %v1176 = vpack.c.bf16 %v1161, %v1160
      %v1177 = vpack.c.bf16 %v1163, %v1162
      %v1178 = vpack.c.bf16 %v1165, %v1164
      %v1179 = vpack.c.bf16 %v1167, %v1166
      %v1180 = vpack.c.bf16 %v1169, %v1168
      %v1181 = vpack.c.bf16 %v1171, %v1170
      %v1182 = vpack.c.bf16 %v1173, %v1172
      %v1183 = vpack.c.bf16 %v1175, %v1174
      %v1184 = vld [vmem:[%s5] sm:$0xf]
      %v1185 = vld [vmem:[%s5 + $0x4] sm:$0xf]
      %v1186 = vld [vmem:[%s5 + $0x8] sm:$0xf]
      %v1187 = vld [vmem:[%s5 + $0xc] sm:$0xf]
      %v1188 = vld [vmem:[%s5 + $0x10] sm:$0xf]
      %v1189 = vld [vmem:[%s5 + $0x14] sm:$0xf]
      %v1190 = vld [vmem:[%s5 + $0x18] sm:$0xf]
      %v1191 = vld [vmem:[%s5 + $0x1c] sm:$0xf]
      %v1192 = vld [vmem:[%s5 + $0x20] sm:$0xf]
      %v1193 = vld [vmem:[%s5 + $0x24] sm:$0xf]
      %v1194 = vld [vmem:[%s5 + $0x28] sm:$0xf]
      %v1195 = vld [vmem:[%s5 + $0x2c] sm:$0xf]
      %v1196 = vld [vmem:[%s5 + $0x30] sm:$0xf]
      %v1197 = vld [vmem:[%s5 + $0x34] sm:$0xf]
      %v1198 = vld [vmem:[%s5 + $0x38] sm:$0xf]
      %v1199 = vld [vmem:[%s5 + $0x3c] sm:$0xf]
      %v1200 = vld [vmem:[%s6] sm:$0x1]
      %v1202 = vlaneseq
      %v1203 = vshrl.u32 %v1202, 7
      %v1204 = vsub.s32 0, %v1203
      %v1205 = vrot.slane %v1200, %v1204
      %v1223 = vunpack.c.l.b16 %v1184
      %v1224 = vunpack.c.l.b16 %v1185
      %v1225 = vunpack.c.l.b16 %v1186
      %v1226 = vunpack.c.l.b16 %v1187
      %v1227 = vunpack.c.l.b16 %v1188
      %v1228 = vunpack.c.l.b16 %v1189
      %v1229 = vunpack.c.l.b16 %v1190
      %v1230 = vunpack.c.l.b16 %v1191
      %v1231 = vunpack.c.l.b16 %v1192
      %v1232 = vunpack.c.l.b16 %v1193
      %v1233 = vunpack.c.l.b16 %v1194
      %v1234 = vunpack.c.l.b16 %v1195
      %v1235 = vunpack.c.l.b16 %v1196
      %v1236 = vunpack.c.l.b16 %v1197
      %v1237 = vunpack.c.l.b16 %v1198
      %v1238 = vunpack.c.l.b16 %v1199
      %v1239 = vpack.c.b16 %v1224, %v1223
      %v1240 = vpack.c.b16 %v1226, %v1225
      %v1241 = vpack.c.b16 %v1228, %v1227
      %v1242 = vpack.c.b16 %v1230, %v1229
      %v1243 = vpack.c.b16 %v1232, %v1231
      %v1244 = vpack.c.b16 %v1234, %v1233
      %v1245 = vpack.c.b16 %v1236, %v1235
      %v1246 = vpack.c.b16 %v1238, %v1237
      %1255 = vmatprep.subr.bf16.mxu0 0
      %1256 = vmatpush1.bf16.msra.mxu0 %v1239
      %1257 = vmatprep.subr.bf16.mxu0 0
      %1258 = vmatpush1.bf16.msra.mxu0 %v1240
      %1259 = vmatprep.subr.bf16.mxu0 0
      %1260 = vmatpush1.bf16.msra.mxu0 %v1241
      %1261 = vmatprep.subr.bf16.mxu0 0
      %1262 = vmatpush1.bf16.msra.mxu0 %v1242
      %1263 = vmatprep.subr.bf16.mxu0 0
      %1264 = vmatpush1.bf16.msra.mxu0 %v1243
      %1265 = vmatprep.subr.bf16.mxu0 0
      %1266 = vmatpush1.bf16.msra.mxu0 %v1244
      %1267 = vmatprep.subr.bf16.mxu0 0
      %1268 = vmatpush1.bf16.msra.mxu0 %v1245
      %1269 = vmatprep.subr.bf16.mxu0 0
      %1270 = vmatpush1.bf16.msra.mxu0 %v1246
      %1271 = vmatprep.subr.bf16.mxu0 0
      %1272 = vmatpush1.bf16.msra.mxu0 0
      %1273 = vmatprep.subr.bf16.mxu0 0
      %1274 = vmatpush1.bf16.msra.mxu0 0
      %1275 = vmatprep.subr.bf16.mxu0 0
      %1276 = vmatpush1.bf16.msra.mxu0 0
      %1277 = vmatprep.subr.bf16.mxu0 0
      %1278 = vmatpush1.bf16.msra.mxu0 0
      %1279 = vmatprep.subr.bf16.mxu0 0
      %1280 = vmatpush1.bf16.msra.mxu0 0
      %1281 = vmatprep.subr.bf16.mxu0 0
      %1282 = vmatpush1.bf16.msra.mxu0 0
      %1283 = vmatprep.subr.bf16.mxu0 0
      %1284 = vmatpush1.bf16.msra.mxu0 0
      %1285 = vmatprep.subr.bf16.mxu0 0
      %1286 = vmatpush1.bf16.msra.mxu0 0
      %1287 = vmatprep.mubr.bf16.mxu0 0
      %1288 = vmatmul.mubr.bf16.gmra.mrb[0].mxu0 %v1176
      %v1289 = vpop.f32.mrb[0].mxu0
      %v1290 = vadd.f32 %v1205, %v1289
      %v1291 = vpop.f32.mrb[0].mxu0
      %v1292 = vpop.f32.mrb[0].mxu0
      %v1293 = vadd.f32 %v1205, %v1292
      %v1294 = vpop.f32.mrb[0].mxu0
      %1295 = vmatprep.mubr.bf16.mxu0 0
      %1296 = vmatmul.mubr.bf16.gmra.mrb[0].mxu0 %v1177
      %v1297 = vpop.f32.mrb[0].mxu0
      %v1298 = vadd.f32 %v1205, %v1297
      %v1299 = vpop.f32.mrb[0].mxu0
      %v1300 = vpop.f32.mrb[0].mxu0
      %v1301 = vadd.f32 %v1205, %v1300
      %v1302 = vpop.f32.mrb[0].mxu0
      %1303 = vmatprep.mubr.bf16.mxu0 0
      %1304 = vmatmul.mubr.bf16.gmra.mrb[0].mxu0 %v1178
      %v1305 = vpop.f32.mrb[0].mxu0
      %v1306 = vadd.f32 %v1205, %v1305
      %v1307 = vpop.f32.mrb[0].mxu0
      %v1308 = vpop.f32.mrb[0].mxu0
      %v1309 = vadd.f32 %v1205, %v1308
      %v1310 = vpop.f32.mrb[0].mxu0
      %1311 = vmatprep.mubr.bf16.mxu0 0
      %1312 = vmatmul.mubr.bf16.gmra.mrb[0].mxu0 %v1179
      %v1313 = vpop.f32.mrb[0].mxu0
      %v1314 = vadd.f32 %v1205, %v1313
      %v1315 = vpop.f32.mrb[0].mxu0
      %v1316 = vpop.f32.mrb[0].mxu0
      %v1317 = vadd.f32 %v1205, %v1316
      %v1318 = vpop.f32.mrb[0].mxu0
      %1319 = vmatprep.mubr.bf16.mxu0 0
      %1320 = vmatmul.mubr.bf16.gmra.mrb[0].mxu0 %v1180
      %v1321 = vpop.f32.mrb[0].mxu0
      %v1322 = vadd.f32 %v1205, %v1321
      %v1323 = vpop.f32.mrb[0].mxu0
      %v1324 = vpop.f32.mrb[0].mxu0
      %v1325 = vadd.f32 %v1205, %v1324
      %v1326 = vpop.f32.mrb[0].mxu0
      %1327 = vmatprep.mubr.bf16.mxu0 0
      %1328 = vmatmul.mubr.bf16.gmra.mrb[0].mxu0 %v1181
      %v1329 = vpop.f32.mrb[0].mxu0
      %v1330 = vadd.f32 %v1205, %v1329
      %v1331 = vpop.f32.mrb[0].mxu0
      %v1332 = vpop.f32.mrb[0].mxu0
      %v1333 = vadd.f32 %v1205, %v1332
      %v1334 = vpop.f32.mrb[0].mxu0
      %1335 = vmatprep.mubr.bf16.mxu0 0
      %1336 = vmatmul.mubr.bf16.gmra.mrb[0].mxu0 %v1182
      %v1337 = vpop.f32.mrb[0].mxu0
      %v1338 = vadd.f32 %v1205, %v1337
      %v1339 = vpop.f32.mrb[0].mxu0
      %v1340 = vpop.f32.mrb[0].mxu0
      %v1341 = vadd.f32 %v1205, %v1340
      %v1342 = vpop.f32.mrb[0].mxu0
      %1343 = vmatprep.mubr.bf16.mxu0 0
      %1344 = vmatmul.mubr.bf16.gmra.mrb[0].mxu0 %v1183
      %v1345 = vpop.f32.mrb[0].mxu0
      %v1346 = vadd.f32 %v1205, %v1345
      %v1347 = vpop.f32.mrb[0].mxu0
      %v1348 = vpop.f32.mrb[0].mxu0
      %v1349 = vadd.f32 %v1205, %v1348
      %v1350 = vpop.f32.mrb[0].mxu0
      %1351 = vdwg.mxu0
      %vm1352 = vcmask 64512
      %1353 = vst.msk [vmem:[%s280] sm:$0xff] %vm1352, %v1290
      %1354 = vst.msk [vmem:[%s280 + $0x8] sm:$0xff] %vm1352, %v1293
      %1355 = vst.msk [vmem:[%s280 + $0x10] sm:$0xff] %vm1352, %v1298
      %1356 = vst.msk [vmem:[%s280 + $0x18] sm:$0xff] %vm1352, %v1301
      %1357 = vst.msk [vmem:[%s280 + $0x20] sm:$0xff] %vm1352, %v1306
      %1358 = vst.msk [vmem:[%s280 + $0x28] sm:$0xff] %vm1352, %v1309
      %1359 = vst.msk [vmem:[%s280 + $0x30] sm:$0xff] %vm1352, %v1314
      %1360 = vst.msk [vmem:[%s280 + $0x38] sm:$0xff] %vm1352, %v1317
      %1361 = vst.msk [vmem:[%s280 + $0x40] sm:$0xff] %vm1352, %v1322
      %1362 = vst.msk [vmem:[%s280 + $0x48] sm:$0xff] %vm1352, %v1325
      %1363 = vst.msk [vmem:[%s280 + $0x50] sm:$0xff] %vm1352, %v1330
      %1364 = vst.msk [vmem:[%s280 + $0x58] sm:$0xff] %vm1352, %v1333
      %1365 = vst.msk [vmem:[%s280 + $0x60] sm:$0xff] %vm1352, %v1338
      %1366 = vst.msk [vmem:[%s280 + $0x68] sm:$0xff] %vm1352, %v1341
      %1367 = vst.msk [vmem:[%s280 + $0x70] sm:$0xff] %vm1352, %v1346
      %1368 = vst.msk [vmem:[%s280 + $0x78] sm:$0xff] %vm1352, %v1349
      %s1369 = smul.u32 16, %s18
      %p1370 = scmp.lt.s32.totalorder %s1369, 31
      %s1371 = scalar_select %p1370, %s1369, 31
      %s1372 = smul.addr %s1371, 8
      %s1373 = scalar_lea.vmem %s7, %s1372
      // Predicated region
      $region49: #{tpu_custom_call.1} parent=47 // pred_check
        %p1374 = pneg %p188
      $region50: #{tpu_custom_call.1} parent=47 // pred_check_branch
        %1376 = sbr.rel (%p1374) target = $region52
      $region51: #{tpu_custom_call.1} parent=47 // pred_region
        %s1377 = smul.u32 16, %s18
      $region52: #{tpu_custom_call.1} parent=47 // pred_fallthru
        _
    $region48: #{tpu_custom_call.1} parent=5 // pred_fallthru
      _
    %p1378 = scmp.le.s32.totalorder 2, %s13
    // Predicated region
    $region53: #{tpu_custom_call.1} parent=5 // pred_check
      %p1379 = pneg %p1378
    $region54: #{tpu_custom_call.1} parent=5 // pred_check_branch
      %1381 = sbr.rel (%p1379) target = $region56
    $region55: #{tpu_custom_call.1} parent=5 // pred_region
      %s1382 = ssub.s32 %s13, 2
      // Predicated region
      $region57: #{tpu_custom_call.1} parent=55 // pred_check
        %p1383 = pneg %p194
      $region58: #{tpu_custom_call.1} parent=55 // pred_check_branch
        %1385 = sbr.rel (%p1383) target = $region60
      $region59: #{tpu_custom_call.1} parent=55 // pred_region
        %s1386 = smul.u32 16, %s19
        %p1387 = scmp.lt.s32.totalorder %s1386, 31
        %s1388 = scalar_select %p1387, %s1386, 31
        %s1389 = smul.addr %s1388, 8
        %s1390 = scalar_lea.vmem %s7, %s1389
      $region60: #{tpu_custom_call.1} parent=55 // pred_fallthru
        _
    $region56: #{tpu_custom_call.1} parent=5 // pred_fallthru
      _
  $region6: #{tpu_custom_call.1} parent=0 // loop_footer
    %s17 = sadd.s32 1, %s13
  $region7: #{tpu_custom_call.1} parent=0 // loop_footer_branch
    %12 = sbr.rel target = $region3
  $region8: #{tpu_custom_call.1} parent=0 // loop_exit
    _

</llo_original>
